<compile_context>
chip_gen: v6e
topology: v6e:2x2x1
jax: 0.10.0
libtpu: 0.0.40
codegen_flags: <defaults>
</compile_context>

<pallas_src>
import math

import jax
import jax.numpy as jnp
from jax import lax
from jax.experimental import pallas as pl
from jax.experimental.pallas import tpu as pltpu

_LANE = 128


def _ocr_ptr_kernel(q_in_ref, k_in_ref, mask_ref,
                    wq_ref, bq_ref, wk_ref, bk_ref, out_ref):
    """One batch-block per grid step.

    q_in_ref : [Bb, Tq,  H]    bf16
    k_in_ref : [Bb, Tkp, H]    bf16   (Tkp = Tk padded to a multiple of 128)
    mask_ref : [Bb, 1,  Tkp]   f32
    wq_ref   : [H, Dqk]        bf16   (pre-scaled by 1/sqrt(Dqk))
    bq_ref   : [1, Dqk]        f32    (pre-scaled by 1/sqrt(Dqk))
    wk_ref   : [H, Dqk]        bf16
    bk_ref   : [1, Dqk]        f32
    out_ref  : [Bb, Tq, Tkp]   f32
    """
    bb, tq, h = q_in_ref.shape
    _, tkp, _ = k_in_ref.shape
    dqk = wq_ref.shape[1]

    # Fold (batch_block, seq) into the MXU M dimension: one 2-D matmul per
    # projection instead of a tiny matmul per batch element.
    q_rows = q_in_ref[...].reshape(bb * tq, h)       # [Bb*Tq,  H] bf16
    k_rows = k_in_ref[...].reshape(bb * tkp, h)      # [Bb*Tkp, H] bf16

    # bf16 operands, f32 accumulation; biases stay f32.
    q = jnp.dot(q_rows, wq_ref[...],
                preferred_element_type=jnp.float32) + bq_ref[...]   # [Bb*Tq,  Dqk]
    k = jnp.dot(k_rows, wk_ref[...],
                preferred_element_type=jnp.float32) + bk_ref[...]   # [Bb*Tkp, Dqk]

    q3 = q.astype(jnp.bfloat16).reshape(bb, tq, dqk)
    k3 = k.astype(jnp.bfloat16).reshape(bb, tkp, dqk)

    # Batched QK^T as a contraction on the LAST dim of both operands: no
    # explicit k.T, so no XLU transpose feeding the MXU.
    scores = lax.dot_general(
        q3, k3,
        dimension_numbers=(((2,), (2,)), ((0,), (0,))),
        preferred_element_type=jnp.float32)           # [Bb, Tq, Tkp] f32

    # Extended attention mask in f32; padded key columns carry mask==0 so they
    # get -10000 and are sliced away in the wrapper.
    scores = scores + (1.0 - mask_ref[...]) * -10000.0
    out_ref[...] = scores


def _pick_batch_block(batch, tq, tk_pad, h, budget_bytes=4 * 1024 * 1024):
    """Largest divisor of `batch` whose per-step blocks fit a small VMEM budget."""
    per_b = tq * h * 2 + tk_pad * h * 2 + tk_pad * 4 + tq * tk_pad * 4
    cap = max(1, budget_bytes // max(per_b, 1))
    for cand in range(min(batch, cap, 16), 0, -1):
        if batch % cand == 0:
            return cand
    return 1


def ocr_ptr_net(query_inputs, key_inputs, attention_mask, params):
    """Forward pass of OcrPtrNet as a Pallas TPU kernel.

    query_inputs: [B, Tq, H] or [B, H]
    key_inputs:   [B, Tk, H]
    attention_mask: [B, Tk]
    params: dict with 'wq' [H,Dqk], 'bq' [Dqk], 'wk' [H,Dqk], 'bk' [Dqk]
    """
    assert attention_mask.ndim == 2
    squeeze_result = False
    if query_inputs.ndim == 2:
        query_inputs = query_inputs[:, None, :]
        squeeze_result = True

    B, Tq, H = query_inputs.shape
    _, Tk, _ = key_inputs.shape
    Dqk = params["wq"].shape[1]

    # Fold 1/sqrt(Dqk) into the query projection (static param transform),
    # then cast weights/activations to bf16 for the MXU; biases stay f32.
    scale = 1.0 / math.sqrt(Dqk)
    wq = (params["wq"].astype(jnp.float32) * scale).astype(jnp.bfloat16)
    bq = (params["bq"].astype(jnp.float32) * scale).reshape(1, Dqk)
    wk = params["wk"].astype(jnp.bfloat16)
    bk = params["bk"].astype(jnp.float32).reshape(1, Dqk)

    # Lane-dense output: pad the key axis up to a multiple of 128 so output
    # stores are full-lane; padded mask columns are 0 (-> -10000), sliced later.
    Tk_pad = ((Tk + _LANE - 1) // _LANE) * _LANE
    pad_k = Tk_pad - Tk
    key_p = jnp.pad(key_inputs.astype(jnp.bfloat16), ((0, 0), (0, pad_k), (0, 0)))
    mask_p = jnp.pad(attention_mask.astype(jnp.float32), ((0, 0), (0, pad_k)))
    mask_p = mask_p[:, None, :]                       # [B, 1, Tk_pad]
    q_in = query_inputs.astype(jnp.bfloat16)

    # Several batch elements per grid step to amortize per-step overhead.
    bblk = _pick_batch_block(B, Tq, Tk_pad, H)
    grid = (B // bblk,)

    # Explicit VMEM limit with headroom (2x buffering of batch-varying blocks
    # + invariant weights), clamped to the smallest scoped default (v7x-safe).
    blk_bytes = (bblk * Tq * H * 2 + bblk * Tk_pad * H * 2
                 + bblk * Tk_pad * 4 + bblk * Tq * Tk_pad * 4)
    weight_bytes = 2 * H * Dqk * 2 + 2 * Dqk * 4
    vmem_limit = min(max(4 * (2 * blk_bytes + 2 * weight_bytes), 8 * 1024 * 1024),
                     32 * 1024 * 1024)

    out = pl.pallas_call(
        _ocr_ptr_kernel,
        out_shape=jax.ShapeDtypeStruct((B, Tq, Tk_pad), jnp.float32),
        grid_spec=pltpu.PrefetchScalarGridSpec(
            num_scalar_prefetch=0,
            grid=grid,
            in_specs=[
                pl.BlockSpec((bblk, Tq, H), lambda b: (b, 0, 0)),        # query
                pl.BlockSpec((bblk, Tk_pad, H), lambda b: (b, 0, 0)),    # key
                pl.BlockSpec((bblk, 1, Tk_pad), lambda b: (b, 0, 0)),    # mask
                pl.BlockSpec((H, Dqk), lambda b: (0, 0)),                # wq (grid-invariant)
                pl.BlockSpec((1, Dqk), lambda b: (0, 0)),                # bq
                pl.BlockSpec((H, Dqk), lambda b: (0, 0)),                # wk
                pl.BlockSpec((1, Dqk), lambda b: (0, 0)),                # bk
            ],
            out_specs=pl.BlockSpec((bblk, Tq, Tk_pad), lambda b: (b, 0, 0)),
        ),
        compiler_params=pltpu.CompilerParams(
            dimension_semantics=("parallel",),
            vmem_limit_bytes=vmem_limit),
    )(q_in, key_p, mask_p, wq, bq, wk, bk)

    out = out[:, :, :Tk]
    if squeeze_result:
        out = out[:, 0, :]
    return out


def init_params(key, hidden_size, query_key_size=None):
    if query_key_size is None:
        query_key_size = hidden_size
    k1, k2, k3, k4 = jax.random.split(key, 4)
    bound = 1.0 / math.sqrt(hidden_size)  # PyTorch nn.Linear default init range
    # Stored pre-transposed: [in_features, out_features]
    wq = jax.random.uniform(k1, (hidden_size, query_key_size),
                            minval=-bound, maxval=bound, dtype=jnp.float32)
    bq = jax.random.uniform(k2, (query_key_size,),
                            minval=-bound, maxval=bound, dtype=jnp.float32)
    wk = jax.random.uniform(k3, (hidden_size, query_key_size),
                            minval=-bound, maxval=bound, dtype=jnp.float32)
    bk = jax.random.uniform(k4, (query_key_size,),
                            minval=-bound, maxval=bound, dtype=jnp.float32)
    return {"wq": wq, "bq": bq, "wk": wk, "bk": bk}


def _reference(query_inputs, key_inputs, attention_mask, params):
    squeeze_result = False
    if query_inputs.ndim == 2:
        query_inputs = query_inputs[:, None, :]
        squeeze_result = True
    q = jnp.einsum("bth,hd->btd", query_inputs, params["wq"]) + params["bq"]
    k = jnp.einsum("bsh,hd->bsd", key_inputs, params["wk"]) + params["bk"]
    scores = jnp.einsum("btd,bsd->bts", q, k) / math.sqrt(params["wq"].shape[1])
    ext = (1.0 - attention_mask) * -10000.0
    scores = scores + ext[:, None, :]
    if squeeze_result:
        scores = scores[:, 0, :]
    return scores


if __name__ == "__main__":
    B, Tq, Tk, H = 2, 8, 16, 32
    key = jax.random.PRNGKey(0)
    kq, kk, km, kp = jax.random.split(key, 4)

    query_inputs = jax.random.normal(kq, (B, Tq, H), dtype=jnp.float32)
    key_inputs = jax.random.normal(kk, (B, Tk, H), dtype=jnp.float32)
    attention_mask = (jax.random.uniform(km, (B, Tk)) > 0.3).astype(jnp.float32)

    params = init_params(kp, hidden_size=H)

    out = ocr_ptr_net(query_inputs, key_inputs, attention_mask, params)
    out = jax.block_until_ready(out)

    ref = _reference(query_inputs, key_inputs, attention_mask, params)
    assert out.shape == (B, Tq, Tk)
    # bf16 MXU operands (f32 accumulation) -> loosened tolerance vs f32 reference.
    assert jnp.allclose(out, ref, atol=3e-2, rtol=3e-2)

    # Also exercise the 2-D (squeezed) query path of the module.
    out2d = ocr_ptr_net(query_inputs[:, 0, :], key_inputs, attention_mask, params)
    out2d = jax.block_until_ready(out2d)
    ref2d = _reference(query_inputs[:, 0, :], key_inputs, attention_mask, params)
    assert out2d.shape == (B, Tk)
    assert jnp.allclose(out2d, ref2d, atol=3e-2, rtol=3e-2)

    print("KERNEL_OK")
</pallas_src>

<mosaic_0001>
module attributes {stable_mosaic.version = 11 : i64} {
  func.func @_ocr_ptr_kernel(%arg0: i32, %arg1: memref<2x8x32xbf16, #tpu.memory_space<vmem>>, %arg2: memref<2x128x32xbf16, #tpu.memory_space<vmem>>, %arg3: memref<2x1x128xf32, #tpu.memory_space<vmem>>, %arg4: memref<32x32xbf16, #tpu.memory_space<vmem>>, %arg5: memref<1x32xf32, #tpu.memory_space<vmem>>, %arg6: memref<32x32xbf16, #tpu.memory_space<vmem>>, %arg7: memref<1x32xf32, #tpu.memory_space<vmem>>, %arg8: memref<2x8x128xf32, #tpu.memory_space<vmem>>) attributes {dimension_semantics = [#tpu.dimension_semantics<parallel>], iteration_bounds = array<i64: 1>, scalar_prefetch = 0 : i64, scratch_operands = 0 : i64, tpu.core_type = #tpu.core_type<tc>, window_params = [{transform_indices = @transform_0, window_bounds = array<i64: 2, 8, 32>}, {transform_indices = @transform_1, window_bounds = array<i64: 2, 128, 32>}, {transform_indices = @transform_2, window_bounds = array<i64: 2, 1, 128>}, {pipeline_mode = #tpu.pipeline_mode<synchronous>, transform_indices = @transform_3, window_bounds = array<i64: 32, 32>}, {pipeline_mode = #tpu.pipeline_mode<synchronous>, transform_indices = @transform_4, window_bounds = array<i64: 1, 32>}, {pipeline_mode = #tpu.pipeline_mode<synchronous>, transform_indices = @transform_5, window_bounds = array<i64: 32, 32>}, {pipeline_mode = #tpu.pipeline_mode<synchronous>, transform_indices = @transform_6, window_bounds = array<i64: 1, 32>}, {transform_indices = @transform_7, window_bounds = array<i64: 2, 8, 128>}]} {
    %c0 = arith.constant 0 : index
    %c0_0 = arith.constant 0 : index
    %c0_1 = arith.constant 0 : index
    %0 = vector.load %arg1[%c0, %c0_0, %c0_1] : memref<2x8x32xbf16, #tpu.memory_space<vmem>>, vector<2x8x32xbf16>
    %1 = vector.shape_cast %0 : vector<2x8x32xbf16> to vector<16x32xbf16>
    %c0_2 = arith.constant 0 : index
    %c0_3 = arith.constant 0 : index
    %c0_4 = arith.constant 0 : index
    %2 = vector.load %arg2[%c0_2, %c0_3, %c0_4] : memref<2x128x32xbf16, #tpu.memory_space<vmem>>, vector<2x128x32xbf16>
    %3 = vector.shape_cast %2 : vector<2x128x32xbf16> to vector<256x32xbf16>
    %c0_5 = arith.constant 0 : index
    %c0_6 = arith.constant 0 : index
    %4 = vector.load %arg4[%c0_5, %c0_6] : memref<32x32xbf16, #tpu.memory_space<vmem>>, vector<32x32xbf16>
    %cst = arith.constant dense<0.000000e+00> : vector<16x32xf32>
    %5 = tpu.matmul %1, %4, %cst {dimension_numbers = #tpu.dot_dimension_numbers<[1], [0], [0], [1], [0, 0, 1, 1], [], []>} : vector<16x32xbf16>, vector<32x32xbf16>, vector<16x32xf32> -> vector<16x32xf32>
    %c0_7 = arith.constant 0 : index
    %c0_8 = arith.constant 0 : index
    %6 = vector.load %arg5[%c0_7, %c0_8] : memref<1x32xf32, #tpu.memory_space<vmem>>, vector<1x32xf32>
    %7 = vector.broadcast %6 : vector<1x32xf32> to vector<16x32xf32>
    %8 = arith.addf %5, %7 : vector<16x32xf32>
    %c0_9 = arith.constant 0 : index
    %c0_10 = arith.constant 0 : index
    %9 = vector.load %arg6[%c0_9, %c0_10] : memref<32x32xbf16, #tpu.memory_space<vmem>>, vector<32x32xbf16>
    %cst_11 = arith.constant dense<0.000000e+00> : vector<256x32xf32>
    %10 = tpu.matmul %3, %9, %cst_11 {dimension_numbers = #tpu.dot_dimension_numbers<[1], [0], [0], [1], [0, 0, 1, 1], [], []>} : vector<256x32xbf16>, vector<32x32xbf16>, vector<256x32xf32> -> vector<256x32xf32>
    %c0_12 = arith.constant 0 : index
    %c0_13 = arith.constant 0 : index
    %11 = vector.load %arg7[%c0_12, %c0_13] : memref<1x32xf32, #tpu.memory_space<vmem>>, vector<1x32xf32>
    %12 = vector.broadcast %11 : vector<1x32xf32> to vector<256x32xf32>
    %13 = arith.addf %10, %12 : vector<256x32xf32>
    %14 = arith.truncf %8 : vector<16x32xf32> to vector<16x32xbf16>
    %15 = vector.shape_cast %14 : vector<16x32xbf16> to vector<2x8x32xbf16>
    %16 = arith.truncf %13 : vector<256x32xf32> to vector<256x32xbf16>
    %17 = vector.shape_cast %16 : vector<256x32xbf16> to vector<2x128x32xbf16>
    %cst_14 = arith.constant dense<0.000000e+00> : vector<2x8x128xf32>
    %18 = tpu.matmul %15, %17, %cst_14 {dimension_numbers = #tpu.dot_dimension_numbers<[2], [2], [1], [1], [0, 0, 0, 1, 1, 1], [0], [0]>} : vector<2x8x32xbf16>, vector<2x128x32xbf16>, vector<2x8x128xf32> -> vector<2x8x128xf32>
    %c0_15 = arith.constant 0 : index
    %c0_16 = arith.constant 0 : index
    %c0_17 = arith.constant 0 : index
    %19 = vector.load %arg3[%c0_15, %c0_16, %c0_17] : memref<2x1x128xf32, #tpu.memory_space<vmem>>, vector<2x1x128xf32>
    %cst_18 = arith.constant 1.000000e+00 : f32
    %20 = vector.broadcast %cst_18 : f32 to vector<2x1x128xf32>
    %21 = arith.subf %20, %19 : vector<2x1x128xf32>
    %cst_19 = arith.constant -1.000000e+04 : f32
    %22 = vector.broadcast %cst_19 : f32 to vector<2x1x128xf32>
    %23 = arith.mulf %21, %22 : vector<2x1x128xf32>
    %24 = vector.broadcast %23 : vector<2x1x128xf32> to vector<2x8x128xf32>
    %25 = arith.addf %18, %24 : vector<2x8x128xf32>
    %c0_20 = arith.constant 0 : index
    %c0_21 = arith.constant 0 : index
    %c0_22 = arith.constant 0 : index
    %26 = vector.load %arg8[%c0_20, %c0_21, %c0_22] : memref<2x8x128xf32, #tpu.memory_space<vmem>>, vector<2x8x128xf32>
    tpu.vector_store %arg8[%c0_20, %c0_21, %c0_22], %25 {strides = array<i32>} : memref<2x8x128xf32, #tpu.memory_space<vmem>>, vector<2x8x128xf32>,
    return
  }
  func.func @transform_0(%arg0: i32) -> (i32, i32, i32) {
    %c0_i32 = arith.constant 0 : i32
    %c0_i32_0 = arith.constant 0 : i32
    %c0_i32_1 = arith.constant 0 : i32
    return %arg0, %c0_i32, %c0_i32_0 : i32, i32, i32
  }
  func.func @transform_1(%arg0: i32) -> (i32, i32, i32) {
    %c0_i32 = arith.constant 0 : i32
    %c0_i32_0 = arith.constant 0 : i32
    %c0_i32_1 = arith.constant 0 : i32
    return %arg0, %c0_i32, %c0_i32_0 : i32, i32, i32
  }
  func.func @transform_2(%arg0: i32) -> (i32, i32, i32) {
    %c0_i32 = arith.constant 0 : i32
    %c0_i32_0 = arith.constant 0 : i32
    %c0_i32_1 = arith.constant 0 : i32
    return %arg0, %c0_i32, %c0_i32_0 : i32, i32, i32
  }
  func.func @transform_3(%arg0: i32) -> (i32, i32) {
    %c0_i32 = arith.constant 0 : i32
    %c0_i32_0 = arith.constant 0 : i32
    %c0_i32_1 = arith.constant 0 : i32
    return %c0_i32, %c0_i32_0 : i32, i32
  }
  func.func @transform_4(%arg0: i32) -> (i32, i32) {
    %c0_i32 = arith.constant 0 : i32
    %c0_i32_0 = arith.constant 0 : i32
    %c0_i32_1 = arith.constant 0 : i32
    return %c0_i32, %c0_i32_0 : i32, i32
  }
  func.func @transform_5(%arg0: i32) -> (i32, i32) {
    %c0_i32 = arith.constant 0 : i32
    %c0_i32_0 = arith.constant 0 : i32
    %c0_i32_1 = arith.constant 0 : i32
    return %c0_i32, %c0_i32_0 : i32, i32
  }
  func.func @transform_6(%arg0: i32) -> (i32, i32) {
    %c0_i32 = arith.constant 0 : i32
    %c0_i32_0 = arith.constant 0 : i32
    %c0_i32_1 = arith.constant 0 : i32
    return %c0_i32, %c0_i32_0 : i32, i32
  }
  func.func @transform_7(%arg0: i32) -> (i32, i32, i32) {
    %c0_i32 = arith.constant 0 : i32
    %c0_i32_0 = arith.constant 0 : i32
    %c0_i32_1 = arith.constant 0 : i32
    return %arg0, %c0_i32, %c0_i32_0 : i32, i32, i32
  }
}

</mosaic_0001>

<llo_original>
// kernel: tpu_custom_call.1
$region0: #{tpu_custom_call.1}
  #allocation0 [shape = 'u32[]', space=smem, size = 0x4, offset = 0x4, fixed_abs, tag = 'smem constant byte address 0x4 - core index']
  #allocation1 [shape = 'u32[144,128]{1,0:T(1,128)}', space=vmem, size = 0x12000, scoped, tag = 'internal scratch']
  %s0 = inlined_call_operand.vmem [shape: bf16[2,8,32], index: 0, kind: input, shape index: {}]
  %s1 = inlined_call_operand.vmem [shape: bf16[2,128,32], index: 1, kind: input, shape index: {}]
  %s2 = inlined_call_operand.vmem [shape: f32[2,1,128], index: 2, kind: input, shape index: {}]
  %s3 = inlined_call_operand.vmem [shape: bf16[32,32], index: 3, kind: input, shape index: {}]
  %s4 = inlined_call_operand.vmem [shape: f32[1,32], index: 4, kind: input, shape index: {}]
  %s5 = inlined_call_operand.vmem [shape: bf16[32,32], index: 5, kind: input, shape index: {}]
  %s6 = inlined_call_operand.vmem [shape: f32[1,32], index: 6, kind: input, shape index: {}]
  %s7 = inlined_call_operand.hbm [shape: f32[2,8,128], index: 7, kind: output, shape index: {}]
  %s8 = sld [smem:[#allocation0]]
  $region38: #{tpu_custom_call.1} parent=0
    _
  %s10 = ssub.s32 1, %s8
  %s11 = scalar_select 0, %s10, %s8
  $region1: #{tpu_custom_call.1} parent=0
    #allocation2 [shape = 'u8[8192]{0}', space=vmem, size = 0x2000, scoped, tag = 'output window, operand 0, single buffered']
    #allocation3 [shape = 's32[1]{0}', space=sflag, size = 0x4, scoped, tag = 'scoped memory for tpu_custom_call.1']
    %12 = vsyncpa [#allocation3], 0
    // Predicated region
    $region2: #{tpu_custom_call.1} parent=1 // pred_check
      _
    $region3: #{tpu_custom_call.1} parent=1 // pred_check_branch
      %14 = sbr.rel (0) target = $region5
    $region4: #{tpu_custom_call.1} parent=1 // pred_region
      _
    $region5: #{tpu_custom_call.1} parent=1 // pred_fallthru
      _
    // Predicated region
    $region6: #{tpu_custom_call.1} parent=1 // pred_check
      _
    $region7: #{tpu_custom_call.1} parent=1 // pred_check_branch
      %16 = sbr.rel (0) target = $region9
    $region8: #{tpu_custom_call.1} parent=1 // pred_region
      _
    $region9: #{tpu_custom_call.1} parent=1 // pred_fallthru
      _
    // Predicated region
    $region10: #{tpu_custom_call.1} parent=1 // pred_check
      _
    $region11: #{tpu_custom_call.1} parent=1 // pred_check_branch
      %18 = sbr.rel (0) target = $region13
    $region12: #{tpu_custom_call.1} parent=1 // pred_region
      _
    $region13: #{tpu_custom_call.1} parent=1 // pred_fallthru
      _
    // Predicated region
    $region14: #{tpu_custom_call.1} parent=1 // pred_check
      _
    $region15: #{tpu_custom_call.1} parent=1 // pred_check_branch
      %20 = sbr.rel (0) target = $region17
    $region16: #{tpu_custom_call.1} parent=1 // pred_region
      _
    $region17: #{tpu_custom_call.1} parent=1 // pred_fallthru
      _
    // Predicated region
    $region18: #{tpu_custom_call.1} parent=1 // pred_check
      _
    $region19: #{tpu_custom_call.1} parent=1 // pred_check_branch
      %22 = sbr.rel (0) target = $region21
    $region20: #{tpu_custom_call.1} parent=1 // pred_region
      _
    $region21: #{tpu_custom_call.1} parent=1 // pred_fallthru
      _
    // Predicated region
    $region22: #{tpu_custom_call.1} parent=1 // pred_check
      _
    $region23: #{tpu_custom_call.1} parent=1 // pred_check_branch
      %24 = sbr.rel (0) target = $region25
    $region24: #{tpu_custom_call.1} parent=1 // pred_region
      _
    $region25: #{tpu_custom_call.1} parent=1 // pred_fallthru
      _
    // Predicated region
    $region26: #{tpu_custom_call.1} parent=1 // pred_check
      _
    $region27: #{tpu_custom_call.1} parent=1 // pred_check_branch
      %26 = sbr.rel (0) target = $region29
    $region28: #{tpu_custom_call.1} parent=1 // pred_region
      _
    $region29: #{tpu_custom_call.1} parent=1 // pred_fallthru
      _
    %v28 = vld [vmem:[%s0] sm:$0xf]
    %v29 = vld [vmem:[%s0 + $0x4] sm:$0xf]
    %v30 = vld [vmem:[%s1] sm:$0xf]
    %v31 = vld [vmem:[%s1 + $0x4] sm:$0xf]
    %v32 = vld [vmem:[%s1 + $0x8] sm:$0xf]
    %v33 = vld [vmem:[%s1 + $0xc] sm:$0xf]
    %v34 = vld [vmem:[%s1 + $0x10] sm:$0xf]
    %v35 = vld [vmem:[%s1 + $0x14] sm:$0xf]
    %v36 = vld [vmem:[%s1 + $0x18] sm:$0xf]
    %v37 = vld [vmem:[%s1 + $0x1c] sm:$0xf]
    %v38 = vld [vmem:[%s1 + $0x20] sm:$0xf]
    %v39 = vld [vmem:[%s1 + $0x24] sm:$0xf]
    %v40 = vld [vmem:[%s1 + $0x28] sm:$0xf]
    %v41 = vld [vmem:[%s1 + $0x2c] sm:$0xf]
    %v42 = vld [vmem:[%s1 + $0x30] sm:$0xf]
    %v43 = vld [vmem:[%s1 + $0x34] sm:$0xf]
    %v44 = vld [vmem:[%s1 + $0x38] sm:$0xf]
    %v45 = vld [vmem:[%s1 + $0x3c] sm:$0xf]
    %v46 = vld [vmem:[%s1 + $0x40] sm:$0xf]
    %v47 = vld [vmem:[%s1 + $0x44] sm:$0xf]
    %v48 = vld [vmem:[%s1 + $0x48] sm:$0xf]
    %v49 = vld [vmem:[%s1 + $0x4c] sm:$0xf]
    %v50 = vld [vmem:[%s1 + $0x50] sm:$0xf]
    %v51 = vld [vmem:[%s1 + $0x54] sm:$0xf]
    %v52 = vld [vmem:[%s1 + $0x58] sm:$0xf]
    %v53 = vld [vmem:[%s1 + $0x5c] sm:$0xf]
    %v54 = vld [vmem:[%s1 + $0x60] sm:$0xf]
    %v55 = vld [vmem:[%s1 + $0x64] sm:$0xf]
    %v56 = vld [vmem:[%s1 + $0x68] sm:$0xf]
    %v57 = vld [vmem:[%s1 + $0x6c] sm:$0xf]
    %v58 = vld [vmem:[%s1 + $0x70] sm:$0xf]
    %v59 = vld [vmem:[%s1 + $0x74] sm:$0xf]
    %v60 = vld [vmem:[%s1 + $0x78] sm:$0xf]
    %v61 = vld [vmem:[%s1 + $0x7c] sm:$0xf]
    %v62 = vld [vmem:[%s3] sm:$0xf]
    %v63 = vld [vmem:[%s3 + $0x4] sm:$0xf]
    %v64 = vld [vmem:[%s3 + $0x8] sm:$0xf]
    %v65 = vld [vmem:[%s3 + $0xc] sm:$0xf]
    %v66 = vld [vmem:[%s4] sm:$0x1]
    %v68 = vlaneseq
    %v69 = vshrl.u32 %v68, 7
    %v70 = vsub.s32 0, %v69
    %v71 = vrot.slane %v66, %v70
    %v75 = vunpack.c.l.b16 %v28
    %v76 = vunpack.c.l.b16 %v29
    %v77 = vpack.c.b16 %v76, %v75
    %v82 = vunpack.c.l.b16 %v62
    %v83 = vunpack.c.l.b16 %v63
    %v84 = vunpack.c.l.b16 %v64
    %v85 = vunpack.c.l.b16 %v65
    %v86 = vpack.c.b16 %v83, %v82
    %v87 = vpack.c.b16 %v85, %v84
    %vm90 = vcmask 261120
    %v92 = vsel %vm90, %v77, 0
    %94 = vmatprep.subr.bf16.mxu0 0
    %95 = vmatpush1.bf16.msra.mxu0 0
    %96 = vmatprep.subr.bf16.mxu0 0
    %97 = vmatpush1.bf16.msra.mxu0 0
    %98 = vmatprep.subr.bf16.mxu0 0
    %99 = vmatpush1.bf16.msra.mxu0 0
    %100 = vmatprep.subr.bf16.mxu0 0
    %101 = vmatpush1.bf16.msra.mxu0 0
    %102 = vmatprep.subr.bf16.mxu0 0
    %103 = vmatpush1.bf16.msra.mxu0 0
    %104 = vmatprep.subr.bf16.mxu0 0
    %105 = vmatpush1.bf16.msra.mxu0 0
    %106 = vmatprep.subr.bf16.mxu0 0
    %107 = vmatpush1.bf16.msra.mxu0 %v87
    %108 = vmatprep.subr.bf16.mxu0 0
    %109 = vmatpush1.bf16.msra.mxu0 %v86
    %110 = vmatprep.subr.bf16.mxu0 0
    %111 = vmatpush2.bf16.msra.mxu0 0
    %112 = vmatprep.subr.bf16.mxu0 0
    %113 = vmatpush2.bf16.msra.mxu0 0
    %114 = vmatprep.subr.bf16.mxu0 0
    %115 = vmatpush2.bf16.msra.mxu0 0
    %116 = vmatprep.subr.bf16.mxu0 0
    %117 = vmatpush2.bf16.msra.mxu0 0
    %118 = vmatprep.subr.bf16.mxu0 0
    %119 = vmatpush2.bf16.msra.mxu0 0
    %120 = vmatprep.subr.bf16.mxu0 0
    %121 = vmatpush2.bf16.msra.mxu0 0
    %122 = vmatprep.subr.bf16.mxu0 0
    %123 = vmatpush2.bf16.msra.mxu0 0
    %124 = vmatprep.subr.bf16.mxu0 0
    %125 = vmatpush2.bf16.msra.mxu0 0
    %126 = vmatprep.mubr.bf16.mxu0 0
    %127 = vmatmul.mubr.bf16.gmra.mxu0 %v92
    %v128 = vpop.f32.mrf.mxu0
    %v129 = vadd.f32 %v71, %v128
    %v130 = vpop.f32.mrf.mxu0
    %v131 = vpop.f32.mrf.mxu0
    %v132 = vadd.f32 %v71, %v131
    %v133 = vpop.f32.mrf.mxu0
    %134 = vdwg.mxu0
    %v135 = vld [vmem:[%s5] sm:$0xf]
    %v136 = vld [vmem:[%s5 + $0x4] sm:$0xf]
    %v137 = vld [vmem:[%s5 + $0x8] sm:$0xf]
    %v138 = vld [vmem:[%s5 + $0xc] sm:$0xf]
    %v139 = vld [vmem:[%s6] sm:$0x1]
    %v141 = vlaneseq
    %v142 = vshrl.u32 %v141, 7
    %v143 = vsub.s32 0, %v142
    %v144 = vrot.slane %v139, %v143
    %v178 = vunpack.c.l.b16 %v30
    %v179 = vunpack.c.l.b16 %v31
    %v180 = vunpack.c.l.b16 %v32
    %v181 = vunpack.c.l.b16 %v33
    %v182 = vunpack.c.l.b16 %v34
    %v183 = vunpack.c.l.b16 %v35
    %v184 = vunpack.c.l.b16 %v36
    %v185 = vunpack.c.l.b16 %v37
    %v186 = vunpack.c.l.b16 %v38
    %v187 = vunpack.c.l.b16 %v39
    %v188 = vunpack.c.l.b16 %v40
    %v189 = vunpack.c.l.b16 %v41
    %v190 = vunpack.c.l.b16 %v42
    %v191 = vunpack.c.l.b16 %v43
    %v192 = vunpack.c.l.b16 %v44
    %v193 = vunpack.c.l.b16 %v45
    %v194 = vunpack.c.l.b16 %v46
    %v195 = vunpack.c.l.b16 %v47
    %v196 = vunpack.c.l.b16 %v48
    %v197 = vunpack.c.l.b16 %v49
    %v198 = vunpack.c.l.b16 %v50
    %v199 = vunpack.c.l.b16 %v51
    %v200 = vunpack.c.l.b16 %v52
    %v201 = vunpack.c.l.b16 %v53
    %v202 = vunpack.c.l.b16 %v54
    %v203 = vunpack.c.l.b16 %v55
    %v204 = vunpack.c.l.b16 %v56
    %v205 = vunpack.c.l.b16 %v57
    %v206 = vunpack.c.l.b16 %v58
    %v207 = vunpack.c.l.b16 %v59
    %v208 = vunpack.c.l.b16 %v60
    %v209 = vunpack.c.l.b16 %v61
    %v210 = vpack.c.b16 %v179, %v178
    %v211 = vpack.c.b16 %v181, %v180
    %v212 = vpack.c.b16 %v183, %v182
    %v213 = vpack.c.b16 %v185, %v184
    %v214 = vpack.c.b16 %v187, %v186
    %v215 = vpack.c.b16 %v189, %v188
    %v216 = vpack.c.b16 %v191, %v190
    %v217 = vpack.c.b16 %v193, %v192
    %v218 = vpack.c.b16 %v195, %v194
    %v219 = vpack.c.b16 %v197, %v196
    %v220 = vpack.c.b16 %v199, %v198
    %v221 = vpack.c.b16 %v201, %v200
    %v222 = vpack.c.b16 %v203, %v202
    %v223 = vpack.c.b16 %v205, %v204
    %v224 = vpack.c.b16 %v207, %v206
    %v225 = vpack.c.b16 %v209, %v208
    %v230 = vunpack.c.l.b16 %v135
    %v231 = vunpack.c.l.b16 %v136
    %v232 = vunpack.c.l.b16 %v137
    %v233 = vunpack.c.l.b16 %v138
    %v234 = vpack.c.b16 %v231, %v230
    %v235 = vpack.c.b16 %v233, %v232
    %v239 = vsel %vm90, %v210, 0
    %v242 = vsel %vm90, %v211, 0
    %v245 = vsel %vm90, %v212, 0
    %v248 = vsel %vm90, %v213, 0
    %v251 = vsel %vm90, %v214, 0
    %v254 = vsel %vm90, %v215, 0
    %v257 = vsel %vm90, %v216, 0
    %v260 = vsel %vm90, %v217, 0
    %v263 = vsel %vm90, %v218, 0
    %v266 = vsel %vm90, %v219, 0
    %v269 = vsel %vm90, %v220, 0
    %v272 = vsel %vm90, %v221, 0
    %v275 = vsel %vm90, %v222, 0
    %v278 = vsel %vm90, %v223, 0
    %v281 = vsel %vm90, %v224, 0
    %v284 = vsel %vm90, %v225, 0
    %286 = vmatprep.subr.bf16.mxu0 0
    %287 = vmatpush1.bf16.msra.mxu0 0
    %288 = vmatprep.subr.bf16.mxu0 0
    %289 = vmatpush1.bf16.msra.mxu0 0
    %290 = vmatprep.subr.bf16.mxu0 0
    %291 = vmatpush1.bf16.msra.mxu0 0
    %292 = vmatprep.subr.bf16.mxu0 0
    %293 = vmatpush1.bf16.msra.mxu0 0
    %294 = vmatprep.subr.bf16.mxu0 0
    %295 = vmatpush1.bf16.msra.mxu0 0
    %296 = vmatprep.subr.bf16.mxu0 0
    %297 = vmatpush1.bf16.msra.mxu0 0
    %298 = vmatprep.subr.bf16.mxu0 0
    %299 = vmatpush1.bf16.msra.mxu0 %v235
    %300 = vmatprep.subr.bf16.mxu0 0
    %301 = vmatpush1.bf16.msra.mxu0 %v234
    %302 = vmatprep.subr.bf16.mxu0 0
    %303 = vmatpush2.bf16.msra.mxu0 0
    %304 = vmatprep.subr.bf16.mxu0 0
    %305 = vmatpush2.bf16.msra.mxu0 0
    %306 = vmatprep.subr.bf16.mxu0 0
    %307 = vmatpush2.bf16.msra.mxu0 0
    %308 = vmatprep.subr.bf16.mxu0 0
    %309 = vmatpush2.bf16.msra.mxu0 0
    %310 = vmatprep.subr.bf16.mxu0 0
    %311 = vmatpush2.bf16.msra.mxu0 0
    %312 = vmatprep.subr.bf16.mxu0 0
    %313 = vmatpush2.bf16.msra.mxu0 0
    %314 = vmatprep.subr.bf16.mxu0 0
    %315 = vmatpush2.bf16.msra.mxu0 0
    %316 = vmatprep.subr.bf16.mxu0 0
    %317 = vmatpush2.bf16.msra.mxu0 0
    %318 = vmatprep.mubr.bf16.mxu0 0
    %319 = vmatmul.mubr.bf16.gmra.mxu0 %v239
    %v320 = vpop.f32.mrf.mxu0
    %v321 = vadd.f32 %v144, %v320
    %v322 = vpop.f32.mrf.mxu0
    %v323 = vpop.f32.mrf.mxu0
    %v324 = vadd.f32 %v144, %v323
    %v325 = vpop.f32.mrf.mxu0
    %326 = vmatprep.mubr.bf16.mxu0 0
    %327 = vmatmul.mubr.bf16.gmra.mxu0 %v242
    %v328 = vpop.f32.mrf.mxu0
    %v329 = vadd.f32 %v144, %v328
    %v330 = vpop.f32.mrf.mxu0
    %v331 = vpop.f32.mrf.mxu0
    %v332 = vadd.f32 %v144, %v331
    %v333 = vpop.f32.mrf.mxu0
    %334 = vmatprep.mubr.bf16.mxu0 0
    %335 = vmatmul.mubr.bf16.gmra.mxu0 %v245
    %v336 = vpop.f32.mrf.mxu0
    %v337 = vadd.f32 %v144, %v336
    %v338 = vpop.f32.mrf.mxu0
    %v339 = vpop.f32.mrf.mxu0
    %v340 = vadd.f32 %v144, %v339
    %v341 = vpop.f32.mrf.mxu0
    %342 = vmatprep.mubr.bf16.mxu0 0
    %343 = vmatmul.mubr.bf16.gmra.mxu0 %v248
    %v344 = vpop.f32.mrf.mxu0
    %v345 = vadd.f32 %v144, %v344
    %v346 = vpop.f32.mrf.mxu0
    %v347 = vpop.f32.mrf.mxu0
    %v348 = vadd.f32 %v144, %v347
    %v349 = vpop.f32.mrf.mxu0
    %350 = vmatprep.mubr.bf16.mxu0 0
    %351 = vmatmul.mubr.bf16.gmra.mxu0 %v251
    %v352 = vpop.f32.mrf.mxu0
    %v353 = vadd.f32 %v144, %v352
    %v354 = vpop.f32.mrf.mxu0
    %v355 = vpop.f32.mrf.mxu0
    %v356 = vadd.f32 %v144, %v355
    %v357 = vpop.f32.mrf.mxu0
    %358 = vmatprep.mubr.bf16.mxu0 0
    %359 = vmatmul.mubr.bf16.gmra.mxu0 %v254
    %v360 = vpop.f32.mrf.mxu0
    %v361 = vadd.f32 %v144, %v360
    %v362 = vpop.f32.mrf.mxu0
    %v363 = vpop.f32.mrf.mxu0
    %v364 = vadd.f32 %v144, %v363
    %v365 = vpop.f32.mrf.mxu0
    %366 = vmatprep.mubr.bf16.mxu0 0
    %367 = vmatmul.mubr.bf16.gmra.mxu0 %v257
    %v368 = vpop.f32.mrf.mxu0
    %v369 = vadd.f32 %v144, %v368
    %v370 = vpop.f32.mrf.mxu0
    %v371 = vpop.f32.mrf.mxu0
    %v372 = vadd.f32 %v144, %v371
    %v373 = vpop.f32.mrf.mxu0
    %374 = vmatprep.mubr.bf16.mxu0 0
    %375 = vmatmul.mubr.bf16.gmra.mxu0 %v260
    %v376 = vpop.f32.mrf.mxu0
    %v377 = vadd.f32 %v144, %v376
    %v378 = vpop.f32.mrf.mxu0
    %v379 = vpop.f32.mrf.mxu0
    %v380 = vadd.f32 %v144, %v379
    %v381 = vpop.f32.mrf.mxu0
    %382 = vmatprep.mubr.bf16.mxu0 0
    %383 = vmatmul.mubr.bf16.gmra.mxu0 %v263
    %v384 = vpop.f32.mrf.mxu0
    %v385 = vadd.f32 %v144, %v384
    %v386 = vpop.f32.mrf.mxu0
    %v387 = vpop.f32.mrf.mxu0
    %v388 = vadd.f32 %v144, %v387
    %v389 = vpop.f32.mrf.mxu0
    %390 = vmatprep.mubr.bf16.mxu0 0
    %391 = vmatmul.mubr.bf16.gmra.mxu0 %v266
    %v392 = vpop.f32.mrf.mxu0
    %v393 = vadd.f32 %v144, %v392
    %v394 = vpop.f32.mrf.mxu0
    %v395 = vpop.f32.mrf.mxu0
    %v396 = vadd.f32 %v144, %v395
    %v397 = vpop.f32.mrf.mxu0
    %398 = vmatprep.mubr.bf16.mxu0 0
    %399 = vmatmul.mubr.bf16.gmra.mxu0 %v269
    %v400 = vpop.f32.mrf.mxu0
    %v401 = vadd.f32 %v144, %v400
    %v402 = vpop.f32.mrf.mxu0
    %v403 = vpop.f32.mrf.mxu0
    %v404 = vadd.f32 %v144, %v403
    %v405 = vpop.f32.mrf.mxu0
    %406 = vmatprep.mubr.bf16.mxu0 0
    %407 = vmatmul.mubr.bf16.gmra.mxu0 %v272
    %v408 = vpop.f32.mrf.mxu0
    %v409 = vadd.f32 %v144, %v408
    %v410 = vpop.f32.mrf.mxu0
    %v411 = vpop.f32.mrf.mxu0
    %v412 = vadd.f32 %v144, %v411
    %v413 = vpop.f32.mrf.mxu0
    %414 = vmatprep.mubr.bf16.mxu0 0
    %415 = vmatmul.mubr.bf16.gmra.mxu0 %v275
    %v416 = vpop.f32.mrf.mxu0
    %v417 = vadd.f32 %v144, %v416
    %v418 = vpop.f32.mrf.mxu0
    %v419 = vpop.f32.mrf.mxu0
    %v420 = vadd.f32 %v144, %v419
    %v421 = vpop.f32.mrf.mxu0
    %422 = vmatprep.mubr.bf16.mxu0 0
    %423 = vmatmul.mubr.bf16.gmra.mxu0 %v278
    %v424 = vpop.f32.mrf.mxu0
    %v425 = vadd.f32 %v144, %v424
    %v426 = vpop.f32.mrf.mxu0
    %v427 = vpop.f32.mrf.mxu0
    %v428 = vadd.f32 %v144, %v427
    %v429 = vpop.f32.mrf.mxu0
    %430 = vmatprep.mubr.bf16.mxu0 0
    %431 = vmatmul.mubr.bf16.gmra.mxu0 %v281
    %v432 = vpop.f32.mrf.mxu0
    %v433 = vadd.f32 %v144, %v432
    %v434 = vpop.f32.mrf.mxu0
    %v435 = vpop.f32.mrf.mxu0
    %v436 = vadd.f32 %v144, %v435
    %v437 = vpop.f32.mrf.mxu0
    %438 = vmatprep.mubr.bf16.mxu0 0
    %439 = vmatmul.mubr.bf16.gmra.mxu0 %v284
    %v440 = vpop.f32.mrf.mxu0
    %v441 = vadd.f32 %v144, %v440
    %v442 = vpop.f32.mrf.mxu0
    %v443 = vpop.f32.mrf.mxu0
    %v444 = vadd.f32 %v144, %v443
    %v445 = vpop.f32.mrf.mxu0
    %446 = vdwg.mxu0
    %v447 = vpack.c.bf16 %v132, %v129
    %v449 = vunpack.c.l.b16 %v447
    %v450 = vunpack.c.h.b16 %v447
    %v451 = vpack.c.b16 %v449, %v449
    %v452 = vpack.c.b16 %v450, %v450
    %v453 = vpack.c.bf16 %v324, %v321
    %v454 = vpack.c.bf16 %v332, %v329
    %v455 = vpack.c.bf16 %v340, %v337
    %v456 = vpack.c.bf16 %v348, %v345
    %v457 = vpack.c.bf16 %v356, %v353
    %v458 = vpack.c.bf16 %v364, %v361
    %v459 = vpack.c.bf16 %v372, %v369
    %v460 = vpack.c.bf16 %v380, %v377
    %v461 = vpack.c.bf16 %v388, %v385
    %v462 = vpack.c.bf16 %v396, %v393
    %v463 = vpack.c.bf16 %v404, %v401
    %v464 = vpack.c.bf16 %v412, %v409
    %v465 = vpack.c.bf16 %v420, %v417
    %v466 = vpack.c.bf16 %v428, %v425
    %v467 = vpack.c.bf16 %v436, %v433
    %v468 = vpack.c.bf16 %v444, %v441
    %v469 = vld [vmem:[%s2] sm:$0x1]
    %v470 = vld [vmem:[%s2 + $0x1] sm:$0x1]
    %v471 = vsub.f32 1.0, %v469
    %v472 = vsub.f32 1.0, %v470
    %v473 = vmul.f32 %v471, -10000.0
    %v474 = vmul.f32 %v472, -10000.0
    %v477 = vlaneseq
    %v478 = vshrl.u32 %v477, 7
    %v479 = vsub.s32 0, %v478
    %v480 = vrot.slane %v473, %v479
    %v481 = vlaneseq
    %v482 = vshrl.u32 %v481, 7
    %v483 = vsub.s32 0, %v482
    %v484 = vrot.slane %v474, %v483
    %v488 = vsel %vm90, %v451, 0
    %v491 = vsel %vm90, %v453, 0
    %v494 = vsel %vm90, %v454, 0
    %v497 = vsel %vm90, %v455, 0
    %v500 = vsel %vm90, %v456, 0
    %v503 = vsel %vm90, %v457, 0
    %v506 = vsel %vm90, %v458, 0
    %v509 = vsel %vm90, %v459, 0
    %v512 = vsel %vm90, %v460, 0
    %514 = vmatprep.subr.bf16.mxu0 0
    %515 = vmatpush1.bf16.xpose.msra.mxu0 %v512
    %516 = vmatprep.subr.bf16.mxu0 0
    %517 = vmatpush1.bf16.xpose.msra.mxu0 %v509
    %518 = vmatprep.subr.bf16.mxu0 0
    %519 = vmatpush1.bf16.xpose.msra.mxu0 %v506
    %520 = vmatprep.subr.bf16.mxu0 0
    %521 = vmatpush1.bf16.xpose.msra.mxu0 %v503
    %522 = vmatprep.subr.bf16.mxu0 0
    %523 = vmatpush1.bf16.xpose.msra.mxu0 %v500
    %524 = vmatprep.subr.bf16.mxu0 0
    %525 = vmatpush1.bf16.xpose.msra.mxu0 %v497
    %526 = vmatprep.subr.bf16.mxu0 0
    %527 = vmatpush1.bf16.xpose.msra.mxu0 %v494
    %528 = vmatprep.subr.bf16.mxu0 0
    %529 = vmatpush1.bf16.xpose.msra.mxu0 %v491
    %530 = vmatprep.subr.bf16.mxu0 0
    %531 = vmatpush2.bf16.xpose.msra.mxu0 0
    %532 = vmatprep.subr.bf16.mxu0 0
    %533 = vmatpush2.bf16.xpose.msra.mxu0 0
    %534 = vmatprep.subr.bf16.mxu0 0
    %535 = vmatpush2.bf16.xpose.msra.mxu0 0
    %536 = vmatprep.subr.bf16.mxu0 0
    %537 = vmatpush2.bf16.xpose.msra.mxu0 0
    %538 = vmatprep.subr.bf16.mxu0 0
    %539 = vmatpush2.bf16.xpose.msra.mxu0 0
    %540 = vmatprep.subr.bf16.mxu0 0
    %541 = vmatpush2.bf16.xpose.msra.mxu0 0
    %542 = vmatprep.subr.bf16.mxu0 0
    %543 = vmatpush2.bf16.xpose.msra.mxu0 0
    %544 = vmatprep.subr.bf16.mxu0 0
    %545 = vmatpush2.bf16.xpose.msra.mxu0 0
    %546 = vmatprep.mubr.bf16.mxu0 0
    %547 = vmatmul.mubr.bf16.gmra.mxu0 %v488
    %v548 = vpop.f32.mrf.mxu0
    %v549 = vadd.f32 %v480, %v548
    %v550 = vpop.f32.mrf.mxu0
    %v551 = vpop.f32.mrf.mxu0
    %v552 = vpop.f32.mrf.mxu0
    %553 = vdwg.mxu0
    %v555 = vsel %vm90, %v452, 0
    %v558 = vsel %vm90, %v461, 0
    %v561 = vsel %vm90, %v462, 0
    %v564 = vsel %vm90, %v463, 0
    %v567 = vsel %vm90, %v464, 0
    %v570 = vsel %vm90, %v465, 0
    %v573 = vsel %vm90, %v466, 0
    %v576 = vsel %vm90, %v467, 0
    %v579 = vsel %vm90, %v468, 0
    %581 = vmatprep.subr.bf16.mxu0 0
    %582 = vmatpush1.bf16.xpose.msra.mxu0 %v579
    %583 = vmatprep.subr.bf16.mxu0 0
    %584 = vmatpush1.bf16.xpose.msra.mxu0 %v576
    %585 = vmatprep.subr.bf16.mxu0 0
    %586 = vmatpush1.bf16.xpose.msra.mxu0 %v573
    %587 = vmatprep.subr.bf16.mxu0 0
    %588 = vmatpush1.bf16.xpose.msra.mxu0 %v570
    %589 = vmatprep.subr.bf16.mxu0 0
    %590 = vmatpush1.bf16.xpose.msra.mxu0 %v567
    %591 = vmatprep.subr.bf16.mxu0 0
    %592 = vmatpush1.bf16.xpose.msra.mxu0 %v564
    %593 = vmatprep.subr.bf16.mxu0 0
    %594 = vmatpush1.bf16.xpose.msra.mxu0 %v561
    %595 = vmatprep.subr.bf16.mxu0 0
    %596 = vmatpush1.bf16.xpose.msra.mxu0 %v558
    %597 = vmatprep.subr.bf16.mxu0 0
    %598 = vmatpush2.bf16.xpose.msra.mxu0 0
    %599 = vmatprep.subr.bf16.mxu0 0
    %600 = vmatpush2.bf16.xpose.msra.mxu0 0
    %601 = vmatprep.subr.bf16.mxu0 0
    %602 = vmatpush2.bf16.xpose.msra.mxu0 0
    %603 = vmatprep.subr.bf16.mxu0 0
    %604 = vmatpush2.bf16.xpose.msra.mxu0 0
    %605 = vmatprep.subr.bf16.mxu0 0
    %606 = vmatpush2.bf16.xpose.msra.mxu0 0
    %607 = vmatprep.subr.bf16.mxu0 0
    %608 = vmatpush2.bf16.xpose.msra.mxu0 0
    %609 = vmatprep.subr.bf16.mxu0 0
    %610 = vmatpush2.bf16.xpose.msra.mxu0 0
    %611 = vmatprep.subr.bf16.mxu0 0
    %612 = vmatpush2.bf16.xpose.msra.mxu0 0
    %613 = vmatprep.mubr.bf16.mxu0 0
    %614 = vmatmul.mubr.bf16.gmra.mxu0 %v555
    %v615 = vpop.f32.mrf.mxu0
    %v616 = vadd.f32 %v484, %v615
    %v617 = vpop.f32.mrf.mxu0
    %v618 = vpop.f32.mrf.mxu0
    %v619 = vpop.f32.mrf.mxu0
    %620 = vdwg.mxu0
    %621 = vst [vmem:[#allocation2] sm:$0xff] %v549
    %622 = vst [vmem:[#allocation2 + $0x8] sm:$0xff] %v616
    // Predicated region
    $region30: #{tpu_custom_call.1} parent=1 // pred_check
      _
    $region31: #{tpu_custom_call.1} parent=1 // pred_check_branch
      %624 = sbr.rel (0) target = $region33
    $region32: #{tpu_custom_call.1} parent=1 // pred_region
      %s626 = ssub.s32 256, 256
      %627 = vsyncadd [#allocation3], %s626
      %s628 = sshll.u32 [#allocation2], 4
      %s629 = int_to_ptr.vmem [resolvable:$true] %s628
      %634 = dma.vmem_to_hbm [thread:$0]  %s629, 256, %s7, [#allocation3], 128, 128, 8
    $region33: #{tpu_custom_call.1} parent=1 // pred_fallthru
      _
    // Predicated region
    $region34: #{tpu_custom_call.1} parent=1 // pred_check
      _
    $region35: #{tpu_custom_call.1} parent=1 // pred_check_branch
      %636 = sbr.rel (0) target = $region37
    $region36: #{tpu_custom_call.1} parent=1 // pred_region
      %637 = dma.done [#allocation3], 256
    $region37: #{tpu_custom_call.1} parent=1 // pred_fallthru
      _
    %638 = vsyncpa [#allocation3], 1

</llo_original>
